<compile_context>
chip_gen: v5e
topology: v5e:2x2
jax: 0.10.0
libtpu: 0.0.40
codegen_flags: <defaults>
</compile_context>

<pallas_src>
import math
import functools

import jax
import jax.numpy as jnp
from jax.experimental import pallas as pl
from jax.experimental.pallas import tpu as pltpu


# ----------------------------------------------------------------------------
# Linear kernel:  y = x @ W^T + b  (W is passed pre-transposed as (in, out))
# Tiled over the M (rows) dimension; weight/bias blocks stay resident in VMEM.
# ----------------------------------------------------------------------------
def _linear_kernel(x_ref, w_ref, b_ref, o_ref, *, compute_dtype):
    x = x_ref[...].astype(compute_dtype)
    w = w_ref[...].astype(compute_dtype)
    y = jnp.dot(x, w, preferred_element_type=jnp.float32)
    o_ref[...] = (y + b_ref[...]).astype(o_ref.dtype)


def pallas_linear(x2d, w_t, b, compute_dtype=jnp.float32, block_m=512):
    """x2d: (M, K), w_t: (K, N) (already transposed), b: (N,) -> (M, N)."""
    M, K = x2d.shape
    N = w_t.shape[1]
    tm = min(block_m, M)
    kern = functools.partial(_linear_kernel, compute_dtype=compute_dtype)
    return pl.pallas_call(
        kern,
        out_shape=jax.ShapeDtypeStruct((M, N), x2d.dtype),
        grid=(pl.cdiv(M, tm),),
        in_specs=[
            pl.BlockSpec((tm, K), lambda i: (i, 0)),
            pl.BlockSpec((K, N), lambda i: (0, 0)),   # resident across M tiles
            pl.BlockSpec((1, N), lambda i: (0, 0)),   # resident across M tiles
        ],
        out_specs=pl.BlockSpec((tm, N), lambda i: (i, 0)),
        compiler_params=pltpu.CompilerParams(
            dimension_semantics=("parallel",)),
    )(x2d, w_t, b.reshape(1, N))


# ----------------------------------------------------------------------------
# Scaled-dot-product attention kernel (all heads of one batch per grid step)
# ----------------------------------------------------------------------------
def _make_attention_kernel(scale, compute_dtype, return_attn):
    def kernel(q_ref, k_ref, v_ref, bias_ref, o_ref, *rest):
        q = q_ref[0] * scale          # (h, S, d_k) f32, scale folded into q
        k = k_ref[0]                  # (h, S, d_k)
        v = v_ref[0]                  # (h, S, d_k)
        bias = bias_ref[0]            # (S, S) additive mask bias (0 or -1e9)

        # Scores: contraction over d_k of both operands (no explicit k.T).
        scores = jnp.einsum(
            "hqd,hkd->hqk",
            q.astype(compute_dtype), k.astype(compute_dtype),
            preferred_element_type=jnp.float32)
        scores = scores + bias[None, :, :]

        # Numerically stable softmax in f32.
        m = jnp.max(scores, axis=-1, keepdims=True)
        e = jnp.exp(scores - m)
        denom = jnp.sum(e, axis=-1, keepdims=True)
        approx = compute_dtype != jnp.float32
        p = e * pl.reciprocal(denom, approx=approx)

        # TODO(synk): nn.Dropout(p=0.1) on p_attn has no RNG-faithful Pallas
        # equivalent here; treated as identity (eval mode).

        o = jnp.einsum(
            "hqk,hkd->hqd",
            p.astype(compute_dtype), v.astype(compute_dtype),
            preferred_element_type=jnp.float32)
        o_ref[0] = o.astype(o_ref.dtype)

        if return_attn:
            rest[0][0] = p.astype(rest[0].dtype)
    return kernel


def pallas_attention(q, k, v, mask_bias, *, compute_dtype=jnp.float32,
                     return_attn=False):
    """q/k/v: (B, h, S, d_k); mask_bias: (B, S, S) additive bias (broadcast over h)."""
    B, H, S, Dk = q.shape
    scale = 1.0 / math.sqrt(Dk)
    kern = _make_attention_kernel(scale, compute_dtype, return_attn)

    o_spec = pl.BlockSpec((1, H, S, Dk), lambda b: (b, 0, 0, 0))
    if return_attn:
        out_shape = (jax.ShapeDtypeStruct((B, H, S, Dk), q.dtype),
                     jax.ShapeDtypeStruct((B, H, S, S), jnp.float32))
        out_specs = (o_spec, pl.BlockSpec((1, H, S, S), lambda b: (b, 0, 0, 0)))
    else:
        out_shape = jax.ShapeDtypeStruct((B, H, S, Dk), q.dtype)
        out_specs = o_spec

    res = pl.pallas_call(
        kern,
        out_shape=out_shape,
        grid=(B,),
        in_specs=[
            pl.BlockSpec((1, H, S, Dk), lambda b: (b, 0, 0, 0)),
            pl.BlockSpec((1, H, S, Dk), lambda b: (b, 0, 0, 0)),
            pl.BlockSpec((1, H, S, Dk), lambda b: (b, 0, 0, 0)),
            pl.BlockSpec((1, S, S), lambda b: (b, 0, 0)),  # mask once per batch
        ],
        out_specs=out_specs,
        compiler_params=pltpu.CompilerParams(
            dimension_semantics=("parallel",)),   # independent (batch) tiles
    )(q, k, v, mask_bias)

    if return_attn:
        return res          # (out, p_attn)
    return res, None


# ----------------------------------------------------------------------------
# MultiHeadedAttention forward (glue in plain JAX, hot paths in Pallas)
# ----------------------------------------------------------------------------
def multi_headed_attention(params, query, key, value, mask, h,
                           compute_dtype=jnp.float32, return_attn=False):
    B, S, D = query.shape
    d_k = D // h

    # Precompute additive mask bias once (single add per element in-kernel).
    mask_bias = jnp.where(mask == 0.0, -1000000000.0, 0.0).astype(jnp.float32)

    if (query is key) and (key is value):
        # Fused QKV projection: one (B*S, D) x (D, 3D) matmul.
        w_qkv = jnp.concatenate(
            [params["wq"].T, params["wk"].T, params["wv"].T], axis=1)
        b_qkv = jnp.concatenate([params["bq"], params["bk"], params["bv"]])
        qkv = pallas_linear(query.reshape(B * S, D), w_qkv, b_qkv, compute_dtype)
        qkv = qkv.reshape(B, S, 3, h, d_k).transpose(2, 0, 3, 1, 4)  # (3,B,h,S,dk)
        q, k, v = qkv[0], qkv[1], qkv[2]
    else:
        def project(x, w, b):
            y = pallas_linear(x.reshape(B * S, D), w.T, b, compute_dtype)
            return y.reshape(B, S, h, d_k).transpose(0, 2, 1, 3)  # (B, h, S, d_k)
        q = project(query, params["wq"], params["bq"])
        k = project(key,   params["wk"], params["bk"])
        v = project(value, params["wv"], params["bv"])

    x, p_attn = pallas_attention(q, k, v, mask_bias,
                                 compute_dtype=compute_dtype,
                                 return_attn=return_attn)

    x = x.transpose(0, 2, 1, 3).reshape(B * S, D)
    out = pallas_linear(x, params["wo"].T, params["bo"], compute_dtype)
    return out.reshape(B, S, D), p_attn


# ----------------------------------------------------------------------------
# Pure-JAX reference (mirrors the PyTorch forward, dropout in eval mode)
# ----------------------------------------------------------------------------
def reference(params, query, key, value, mask, h):
    B, S, D = query.shape
    d_k = D // h

    def lin(x, w, b):
        return x @ w.T + b

    def split(x):
        return x.reshape(B, S, h, d_k).transpose(0, 2, 1, 3)

    q = split(lin(query, params["wq"], params["bq"]))
    k = split(lin(key,   params["wk"], params["bk"]))
    v = split(lin(value, params["wv"], params["bv"]))

    scores = jnp.einsum("bhqd,bhkd->bhqk", q, k) / math.sqrt(d_k)
    scores = jnp.where(mask[:, None, :, :] == 0.0, -1000000000.0, scores)
    p = jax.nn.softmax(scores, axis=-1)
    x = jnp.einsum("bhqk,bhkd->bhqd", p, v)
    x = x.transpose(0, 2, 1, 3).reshape(B, S, D)
    return lin(x, params["wo"], params["bo"]), p


if __name__ == "__main__":
    B, S, D, H = 2, 8, 32, 4   # batch, seq, d_model, heads  (d_k = 8)

    key0 = jax.random.PRNGKey(0)
    ks = jax.random.split(key0, 12)

    def init_linear(kw, kb):
        # deterministic synthetic init (PyTorch Linear shapes: W (out, in), b (out,))
        w = jax.random.normal(kw, (D, D), jnp.float32) * 0.05
        b = jax.random.normal(kb, (D,), jnp.float32) * 0.05
        return w, b

    wq, bq = init_linear(ks[0], ks[1])
    wk, bk = init_linear(ks[2], ks[3])
    wv, bv = init_linear(ks[4], ks[5])
    wo, bo = init_linear(ks[6], ks[7])
    params = dict(wq=wq, bq=bq, wk=wk, bk=bk, wv=wv, bv=bv, wo=wo, bo=bo)

    # padding-style mask (B, S_q, S_k) of 0/1 floats; module does mask.unsqueeze(1)
    valid = (jnp.arange(S)[None, :] < jnp.array([S, S - 2])[:, None]).astype(jnp.float32)
    mask = jnp.broadcast_to(valid[:, None, :], (B, S, S))

    # ---- Test 1: self-attention (fused QKV path), f32 matmuls, attn returned ----
    x_in = jax.random.normal(ks[8], (B, S, D), jnp.float32)
    out, attn = multi_headed_attention(params, x_in, x_in, x_in, mask, H,
                                       compute_dtype=jnp.float32,
                                       return_attn=True)
    out = jax.block_until_ready(out)
    attn = jax.block_until_ready(attn)
    ref_out, ref_attn = reference(params, x_in, x_in, x_in, mask, H)
    assert jnp.allclose(out, ref_out, rtol=1e-4, atol=1e-4), "output mismatch (f32)"
    assert jnp.allclose(attn, ref_attn, rtol=1e-4, atol=1e-4), "attn mismatch (f32)"

    # ---- Test 2: cross-attention (separate projections), bf16 matmul operands ----
    q_in = jax.random.normal(ks[9],  (B, S, D), jnp.float32)
    k_in = jax.random.normal(ks[10], (B, S, D), jnp.float32)
    v_in = jax.random.normal(ks[11], (B, S, D), jnp.float32)
    out2, _ = multi_headed_attention(params, q_in, k_in, v_in, mask, H,
                                     compute_dtype=jnp.bfloat16,
                                     return_attn=False)
    out2 = jax.block_until_ready(out2)
    ref_out2, _ = reference(params, q_in, k_in, v_in, mask, H)
    assert jnp.allclose(out2, ref_out2, rtol=2e-2, atol=2e-2), "output mismatch (bf16)"

    print("KERNEL_OK")
</pallas_src>

<mosaic_0001>
module attributes {stable_mosaic.version = 11 : i64} {
  func.func @_linear_kernel(%arg0: i32, %arg1: memref<16x32xf32, #tpu.memory_space<vmem>>, %arg2: memref<32x96xf32, #tpu.memory_space<vmem>>, %arg3: memref<1x96xf32, #tpu.memory_space<vmem>>, %arg4: memref<16x96xf32, #tpu.memory_space<vmem>>) attributes {dimension_semantics = [#tpu.dimension_semantics<parallel>], iteration_bounds = array<i64: 1>, scalar_prefetch = 0 : i64, scratch_operands = 0 : i64, tpu.core_type = #tpu.core_type<tc>, window_params = [{transform_indices = @transform_0, window_bounds = array<i64: 16, 32>}, {pipeline_mode = #tpu.pipeline_mode<synchronous>, transform_indices = @transform_1, window_bounds = array<i64: 32, 96>}, {pipeline_mode = #tpu.pipeline_mode<synchronous>, transform_indices = @transform_2, window_bounds = array<i64: 1, 96>}, {transform_indices = @transform_3, window_bounds = array<i64: 16, 96>}]} {
    %c0 = arith.constant 0 : index
    %c0_0 = arith.constant 0 : index
    %0 = vector.load %arg1[%c0, %c0_0] : memref<16x32xf32, #tpu.memory_space<vmem>>, vector<16x32xf32>
    %c0_1 = arith.constant 0 : index
    %c0_2 = arith.constant 0 : index
    %1 = vector.load %arg2[%c0_1, %c0_2] : memref<32x96xf32, #tpu.memory_space<vmem>>, vector<32x96xf32>
    %cst = arith.constant dense<0.000000e+00> : vector<16x96xf32>
    %2 = tpu.matmul %0, %1, %cst {dimension_numbers = #tpu.dot_dimension_numbers<[1], [0], [0], [1], [0, 0, 1, 1], [], []>} : vector<16x32xf32>, vector<32x96xf32>, vector<16x96xf32> -> vector<16x96xf32>
    %c0_3 = arith.constant 0 : index
    %c0_4 = arith.constant 0 : index
    %3 = vector.load %arg3[%c0_3, %c0_4] : memref<1x96xf32, #tpu.memory_space<vmem>>, vector<1x96xf32>
    %4 = vector.broadcast %3 : vector<1x96xf32> to vector<16x96xf32>
    %5 = arith.addf %2, %4 : vector<16x96xf32>
    %c0_5 = arith.constant 0 : index
    %c0_6 = arith.constant 0 : index
    %6 = vector.load %arg4[%c0_5, %c0_6] : memref<16x96xf32, #tpu.memory_space<vmem>>, vector<16x96xf32>
    tpu.vector_store %arg4[%c0_5, %c0_6], %5 {strides = array<i32>} : memref<16x96xf32, #tpu.memory_space<vmem>>, vector<16x96xf32>,
    return
  }
  func.func @transform_0(%arg0: i32) -> (i32, i32) {
    %c0_i32 = arith.constant 0 : i32
    %c0_i32_0 = arith.constant 0 : i32
    return %arg0, %c0_i32 : i32, i32
  }
  func.func @transform_1(%arg0: i32) -> (i32, i32) {
    %c0_i32 = arith.constant 0 : i32
    %c0_i32_0 = arith.constant 0 : i32
    %c0_i32_1 = arith.constant 0 : i32
    return %c0_i32, %c0_i32_0 : i32, i32
  }
  func.func @transform_2(%arg0: i32) -> (i32, i32) {
    %c0_i32 = arith.constant 0 : i32
    %c0_i32_0 = arith.constant 0 : i32
    %c0_i32_1 = arith.constant 0 : i32
    return %c0_i32, %c0_i32_0 : i32, i32
  }
  func.func @transform_3(%arg0: i32) -> (i32, i32) {
    %c0_i32 = arith.constant 0 : i32
    %c0_i32_0 = arith.constant 0 : i32
    return %arg0, %c0_i32 : i32, i32
  }
}

</mosaic_0001>

<llo_original>
// kernel: tpu_custom_call.1
$region0: #{tpu_custom_call.1}
  #allocation0 [shape = 'u32[]', space=smem, size = 0x4, offset = 0x4, fixed_abs, tag = 'smem constant byte address 0x4 - core index']
  #allocation1 [shape = 'u32[72,128]{1,0:T(1,128)}', space=vmem, size = 0x9000, scoped, tag = 'internal scratch']
  %s0 = inlined_call_operand.hbm [shape: f32[16,32], index: 0, kind: input, shape index: {}]
  %s1 = inlined_call_operand.hbm [shape: f32[32,96], index: 1, kind: input, shape index: {}]
  %s2 = inlined_call_operand.vmem [shape: f32[1,96], index: 2, kind: input, shape index: {}]
  %s3 = inlined_call_operand.hbm [shape: f32[16,96], index: 3, kind: output, shape index: {}]
  %s4 = sld [smem:[#allocation0]]
  $region30: #{tpu_custom_call.1} parent=0
    _
  %s6 = ssub.s32 1, %s4
  %s7 = scalar_select 0, %s6, %s4
  $region1: #{tpu_custom_call.1} parent=0
    #allocation2 [shape = 'u8[8192]{0}', space=vmem, size = 0x2000, scoped, tag = 'input window, operand 0, single buffered']
    #allocation3 [shape = 's32[1]{0}', space=sflag, size = 0x4, scoped, tag = 'scoped memory for tpu_custom_call.1']
    #allocation4 [shape = 's32[1]{0}', space=sflag, size = 0x4, scoped, tag = 'scoped memory for tpu_custom_call.1']
    #allocation5 [shape = 'u8[16384]{0}', space=vmem, size = 0x4000, scoped, tag = 'input window, operand 1, single buffered']
    #allocation6 [shape = 's32[1]{0}', space=sflag, size = 0x4, scoped, tag = 'scoped memory for tpu_custom_call.1']
    #allocation7 [shape = 'u8[8192]{0}', space=vmem, size = 0x2000, scoped, tag = 'output window, operand 0, single buffered']
    %8 = vsyncpa [#allocation3], 0
    %9 = vsyncpa [#allocation6], 0
    %10 = vsyncpa [#allocation4], 0
    // Predicated region
    $region2: #{tpu_custom_call.1} parent=1 // pred_check
      _
    $region3: #{tpu_custom_call.1} parent=1 // pred_check_branch
      %12 = sbr.rel (0) target = $region5
    $region4: #{tpu_custom_call.1} parent=1 // pred_region
      %14 = vsyncadd [#allocation3], 0
      %s15 = sshll.u32 %s0, 4
      %s16 = int_to_ptr.hbm [resolvable:$true] %s15
      %s17 = sshll.u32 [#allocation2], 4
      %s18 = int_to_ptr.vmem [resolvable:$true] %s17
      %23 = dma.hbm_to_vmem [thread:$0]  %s16, 256, %s18, [#allocation3], 128, 128, 8
    $region5: #{tpu_custom_call.1} parent=1 // pred_fallthru
      _
    // Predicated region
    $region6: #{tpu_custom_call.1} parent=1 // pred_check
      _
    $region7: #{tpu_custom_call.1} parent=1 // pred_check_branch
      %25 = sbr.rel (0) target = $region9
    $region8: #{tpu_custom_call.1} parent=1 // pred_region
      %27 = vsyncadd [#allocation6], 0
      %s28 = sshll.u32 %s1, 4
      %s29 = int_to_ptr.hbm [resolvable:$true] %s28
      %s30 = sshll.u32 [#allocation5], 4
      %s31 = int_to_ptr.vmem [resolvable:$true] %s30
      %36 = dma.hbm_to_vmem [thread:$0]  %s29, 512, %s31, [#allocation6], 128, 128, 8
    $region9: #{tpu_custom_call.1} parent=1 // pred_fallthru
      _
    // Predicated region
    $region10: #{tpu_custom_call.1} parent=1 // pred_check
      _
    $region11: #{tpu_custom_call.1} parent=1 // pred_check_branch
      %38 = sbr.rel (0) target = $region13
    $region12: #{tpu_custom_call.1} parent=1 // pred_region
      _
    $region13: #{tpu_custom_call.1} parent=1 // pred_fallthru
      _
    // Predicated region
    $region14: #{tpu_custom_call.1} parent=1 // pred_check
      _
    $region15: #{tpu_custom_call.1} parent=1 // pred_check_branch
      %40 = sbr.rel (0) target = $region17
    $region16: #{tpu_custom_call.1} parent=1 // pred_region
      %42 = dma.done [#allocation3], 256
    $region17: #{tpu_custom_call.1} parent=1 // pred_fallthru
      _
    // Predicated region
    $region18: #{tpu_custom_call.1} parent=1 // pred_check
      _
    $region19: #{tpu_custom_call.1} parent=1 // pred_check_branch
      %44 = sbr.rel (0) target = $region21
    $region20: #{tpu_custom_call.1} parent=1 // pred_region
      %46 = dma.done [#allocation6], 512
    $region21: #{tpu_custom_call.1} parent=1 // pred_fallthru
      _
    %v47 = vld [vmem:[#allocation2] sm:$0xff]
    %v48 = vld [vmem:[#allocation2 + $0x8] sm:$0xff]
    %v49 = vld [vmem:[#allocation5] sm:$0xff]
    %v50 = vld [vmem:[#allocation5 + $0x8] sm:$0xff]
    %v51 = vld [vmem:[#allocation5 + $0x10] sm:$0xff]
    %v52 = vld [vmem:[#allocation5 + $0x18] sm:$0xff]
    %v53 = vld [vmem:[%s2] sm:$0x1]
    %v55 = vperm.slane %v53, 0
    %vm57 = vcmask 261120
    %v59 = vsel %vm57, %v47, 0
    %v62 = vsel %vm57, %v48, 0
    %64 = vmatpush.msra.mxu0 0.0
    %65 = vmatpush.msra.mxu0 0.0
    %66 = vmatpush.msra.mxu0 0.0
    %67 = vmatpush.msra.mxu0 0.0
    %68 = vmatpush.msra.mxu0 0.0
    %69 = vmatpush.msra.mxu0 0.0
    %70 = vmatpush.msra.mxu0 0.0
    %71 = vmatpush.msra.mxu0 0.0
    %72 = vmatpush.msra.mxu0 0.0
    %73 = vmatpush.msra.mxu0 0.0
    %74 = vmatpush.msra.mxu0 0.0
    %75 = vmatpush.msra.mxu0 0.0
    %76 = vmatpush.msra.mxu0 %v52
    %77 = vmatpush.msra.mxu0 %v51
    %78 = vmatpush.msra.mxu0 %v50
    %79 = vmatpush.msra.mxu0 %v49
    %80 = vmatmul.f32.gmra.mxu0 %v59
    %v81 = vpop.f32.mrf.mxu0
    %v82 = vadd.f32 %v55, %v81
    %83 = vmatmul.f32.gmra.mxu0 %v62
    %v84 = vpop.f32.mrf.mxu0
    %v85 = vadd.f32 %v55, %v84
    %86 = vdwg.mxu0
    %vm87 = vcmask 785408
    %88 = vst.msk [vmem:[#allocation7] sm:$0xff] %vm87, %v82
    %89 = vst.msk [vmem:[#allocation7 + $0x8] sm:$0xff] %vm87, %v85
    // Predicated region
    $region22: #{tpu_custom_call.1} parent=1 // pred_check
      _
    $region23: #{tpu_custom_call.1} parent=1 // pred_check_branch
      %91 = sbr.rel (0) target = $region25
    $region24: #{tpu_custom_call.1} parent=1 // pred_region
      %93 = vsyncadd [#allocation4], 0
      %s94 = sshll.u32 [#allocation7], 4
      %s95 = int_to_ptr.vmem [resolvable:$true] %s94
      %s96 = sshll.u32 %s3, 4
      %s97 = int_to_ptr.hbm [resolvable:$true] %s96
      %102 = dma.vmem_to_hbm [thread:$0]  %s95, 256, %s97, [#allocation4], 128, 128, 8
    $region25: #{tpu_custom_call.1} parent=1 // pred_fallthru
      _
    // Predicated region
    $region26: #{tpu_custom_call.1} parent=1 // pred_check
      _
    $region27: #{tpu_custom_call.1} parent=1 // pred_check_branch
      %104 = sbr.rel (0) target = $region29
    $region28: #{tpu_custom_call.1} parent=1 // pred_region
      %106 = dma.done [#allocation4], 256
    $region29: #{tpu_custom_call.1} parent=1 // pred_fallthru
      _
    %107 = vsyncpa [#allocation3], 1
    %108 = vsyncpa [#allocation6], 1
    %109 = vsyncpa [#allocation4], 1

</llo_original>
